<compile_context>
chip_gen: v6e
topology: v6e:2x2x1
jax: 0.10.0
libtpu: 0.0.40
codegen_flags: <defaults>
</compile_context>

<pallas_src>
import functools

import jax
import jax.numpy as jnp
import numpy as np
from jax.experimental import pallas as pl
from jax.experimental.pallas import tpu as pltpu


def _kl_cross_kernel(p_ref, pg_ref, out_ref, *, total_batch: int):
    # p_ref  : (S_eff, TB) VMEM tile of p in native (steps, batch) layout
    # pg_ref : (S_eff, 1)  geometric-prior column (same block every grid step -> resident)
    # out_ref: (1, 8, 128) lane-dense per-tile partial of sum_{s,b} p_g[s] * log p[s,b]
    tb = p_ref.shape[1]

    logp = jnp.log(p_ref[...].astype(jnp.float32))             # (S_eff, TB)  EUP

    # Mask lanes past the true batch size.  Static condition: full-tile grids compile with
    # no mask at all; ragged grids pay one compare+select per element (VPU, cheap next to
    # the log).  Garbage in the padded edge block may log() to NaN/-inf, but the where
    # select never propagates the unselected branch.
    if total_batch % tb:
        i = pl.program_id(0)
        lane = jax.lax.broadcasted_iota(jnp.int32, logp.shape, 1)
        logp = jnp.where((i * tb + lane) < total_batch, logp, 0.0)

    # Lane (batch) reduce first -> only S_eff multiplies against the prior.
    row_sums = jnp.sum(logp, axis=1, keepdims=True)             # (S_eff, 1)  XLU
    pg = pg_ref[...].astype(jnp.float32)
    # Guard pg == 0 rows (rounded tail / traced-p_g fallback): 0 * (-inf) would be NaN,
    # the reference's where(pg > 0, ..., 0) defines it as 0.
    weighted = jnp.where(pg > 0.0, pg * row_sums, 0.0)
    partial = jnp.sum(weighted)

    out_ref[...] = jnp.full(out_ref.shape, partial, dtype=jnp.float32)


def make_geometric_prior(lambda_p: float, max_steps: int = 1000) -> jnp.ndarray:
    # p_g[k] = lambda_p * (1 - lambda_p)^k  (deterministic parameter init)
    k = jnp.arange(max_steps, dtype=jnp.float32)
    return jnp.float32(lambda_p) * jnp.power(jnp.float32(1.0 - lambda_p), k)


def regularization_loss(p, p_g, *, target_tile_bytes: int = 4 << 20, lane_tile=None):
    """p: (steps, batch) halting distribution; p_g: (max_steps,) prior. Scalar loss."""
    S, B = p.shape
    pg_full = jnp.asarray(p_g, dtype=jnp.float32)[:S]

    # Hoisted constant term: sum_k p_g[k]*log(p_g[k]) with KLDivLoss's 0*log0 := 0.
    safe_pg = jnp.where(pg_full > 0, pg_full, 1.0)
    const_term = jnp.sum(jnp.where(pg_full > 0, pg_full * jnp.log(safe_pg), 0.0))

    # Statically truncate the step axis to the p_g > 0 prefix (rows beyond contribute
    # exactly 0 in the reference).  Rounded up to a sublane multiple of 8; skipped if
    # p_g is a tracer (jit) -- the in-kernel pg>0 guard keeps that path correct too.
    s_eff = S
    try:
        pg_host = np.asarray(pg_full)
        nz = np.flatnonzero(pg_host > 0.0)
        last = (int(nz[-1]) + 1) if nz.size else 1
        s_eff = min(S, -(-last // 8) * 8)
    except Exception:
        s_eff = S

    pg_col = pg_full[:s_eff][:, None]                            # (s_eff, 1)

    # Lane tile sized by bytes (not a fixed lane cap): long contiguous DMA rows, few grid
    # steps.  Ceiling of 20 MiB keeps double-buffered tiles inside v7x's 64 MiB VMEM.
    target = int(min(max(target_tile_bytes, 512 << 10), 20 << 20))
    tb_cap = max(128, (target // (4 * s_eff)) // 128 * 128)
    if lane_tile is not None:                                    # test / tuning override
        tb_cap = int(lane_tile)
    tb = B if B <= tb_cap else tb_cap
    num_tiles = pl.cdiv(B, tb)

    # Explicit scoped-VMEM budget: 2x (p tile + lane-padded prior column) + headroom,
    # floored at the 16 MiB v5e default, capped at 48 MiB for v7x.
    tile_bytes = s_eff * tb * 4
    pg_bytes = s_eff * 128 * 4
    vmem_limit = int(min(max(2 * (tile_bytes + pg_bytes) + (2 << 20), 16 << 20), 48 << 20))

    kernel = functools.partial(_kl_cross_kernel, total_batch=B)
    partials = pl.pallas_call(
        kernel,
        out_shape=jax.ShapeDtypeStruct((num_tiles, 8, 128), jnp.float32),
        grid=(num_tiles,),
        in_specs=[
            pl.BlockSpec((s_eff, tb), lambda i: (0, i)),         # p: pg>0 step prefix, lane slab i
            pl.BlockSpec((s_eff, 1), lambda i: (0, 0)),          # prior column, resident
        ],
        out_specs=pl.BlockSpec((1, 8, 128), lambda i: (i, 0, 0)),  # block-indexed partials
        compiler_params=pltpu.CompilerParams(
            dimension_semantics=("parallel",),                   # v7x: shard tiles over both TCs
            vmem_limit_bytes=vmem_limit,
        ),
    )(p, pg_col)

    cross = jnp.sum(partials[:, 0, 0])                           # tiny wrapper reduce
    return const_term - cross / jnp.float32(B)


def _reference_loss(p, p_g):
    # Plain-JAX KLDivLoss(reduction='batchmean')(log(p.T), p_g) reference.
    p_t = jnp.transpose(p, (1, 0)).astype(jnp.float32)           # (batch, steps)
    pg = p_g[: p_t.shape[1]][None, :].astype(jnp.float32)
    safe_pg = jnp.where(pg > 0, pg, 1.0)
    elem = jnp.where(pg > 0, pg * (jnp.log(safe_pg) - jnp.log(p_t)), 0.0)
    return jnp.sum(elem) / p_t.shape[0]


if __name__ == "__main__":
    lambda_p = 0.2
    max_steps = 1000
    p_g = make_geometric_prior(lambda_p, max_steps)

    # Test 1: demo-scale shapes (single full-batch tile, no masking path).
    steps, batch = 8, 2
    logits = jax.random.normal(jax.random.PRNGKey(0), (steps, batch), dtype=jnp.float32)
    p = jax.nn.softmax(logits, axis=0)                           # normalize over step axis
    loss = jax.block_until_ready(regularization_loss(p, p_g))
    ref = _reference_loss(p, p_g)
    assert jnp.allclose(loss, ref, rtol=1e-5, atol=1e-6), (loss, ref)

    # Test 2: multi-tile parallel grid with a ragged final lane tile (mask + block output).
    steps2, batch2 = 16, 300
    logits2 = jax.random.normal(jax.random.PRNGKey(1), (steps2, batch2), dtype=jnp.float32)
    p2 = jax.nn.softmax(logits2, axis=0)
    loss2 = jax.block_until_ready(regularization_loss(p2, p_g, lane_tile=128))
    ref2 = _reference_loss(p2, p_g)
    assert jnp.allclose(loss2, ref2, rtol=1e-4, atol=1e-5), (loss2, ref2)

    # Test 3: long step axis -> exercises the pg>0 prefix truncation and the 0*log0 guard.
    steps3, batch3 = 512, 128
    logits3 = jax.random.normal(jax.random.PRNGKey(2), (steps3, batch3), dtype=jnp.float32)
    p3 = jax.nn.softmax(logits3, axis=0)
    loss3 = jax.block_until_ready(regularization_loss(p3, p_g))
    ref3 = _reference_loss(p3, p_g)
    assert jnp.allclose(loss3, ref3, rtol=1e-4, atol=1e-5), (loss3, ref3)

    print("KERNEL_OK")
</pallas_src>

<mosaic_0001>
module attributes {stable_mosaic.version = 11 : i64} {
  func.func @_kl_cross_kernel(%arg0: i32, %arg1: memref<8x2xf32, #tpu.memory_space<vmem>>, %arg2: memref<8x1xf32, #tpu.memory_space<vmem>>, %arg3: memref<1x8x128xf32, #tpu.memory_space<vmem>>) attributes {dimension_semantics = [#tpu.dimension_semantics<parallel>], iteration_bounds = array<i64: 1>, scalar_prefetch = 0 : i64, scratch_operands = 0 : i64, tpu.core_type = #tpu.core_type<tc>, window_params = [{transform_indices = @transform_0, window_bounds = array<i64: 8, 2>}, {pipeline_mode = #tpu.pipeline_mode<synchronous>, transform_indices = @transform_1, window_bounds = array<i64: 8, 1>}, {transform_indices = @transform_2, window_bounds = array<i64: 1, 8, 128>}]} {
    %c0 = arith.constant 0 : index
    %c0_0 = arith.constant 0 : index
    %0 = vector.load %arg1[%c0, %c0_0] : memref<8x2xf32, #tpu.memory_space<vmem>>, vector<8x2xf32>
    %1 = math.log %0 : vector<8x2xf32>
    %cst = arith.constant dense<0.000000e+00> : vector<8xf32>
    %2 = vector.multi_reduction <add>, %1, %cst [1] : vector<8x2xf32> to vector<8xf32>
    %3 = vector.shape_cast %2 : vector<8xf32> to vector<8x1xf32>
    %c0_1 = arith.constant 0 : index
    %c0_2 = arith.constant 0 : index
    %4 = vector.load %arg2[%c0_1, %c0_2] : memref<8x1xf32, #tpu.memory_space<vmem>>, vector<8x1xf32>
    %cst_3 = arith.constant 0.000000e+00 : f32
    %5 = vector.broadcast %cst_3 : f32 to vector<8x1xf32>
    %6 = arith.cmpf ogt, %4, %5 : vector<8x1xf32>
    %7 = arith.mulf %4, %3 : vector<8x1xf32>
    %cst_4 = arith.constant 0.000000e+00 : f32
    %8 = vector.broadcast %cst_4 : f32 to vector<8x1xf32>
    %9 = arith.select %6, %7, %8 : vector<8x1xi1>, vector<8x1xf32>
    %10 = vector.shape_cast %9 : vector<8x1xf32> to vector<1x8x1xf32>
    %cst_5 = arith.constant dense<0.000000e+00> : vector<1xf32>
    %11 = vector.multi_reduction <add>, %10, %cst_5 [1, 2] : vector<1x8x1xf32> to vector<1xf32>
    %12 = vector.shape_cast %11 : vector<1xf32> to vector<1x1x1xf32>
    %13 = vector.extract %12[0, 0, 0] : f32 from vector<1x1x1xf32>
    %14 = vector.broadcast %13 : f32 to vector<1x8x128xf32>
    %c0_6 = arith.constant 0 : index
    %c0_7 = arith.constant 0 : index
    %c0_8 = arith.constant 0 : index
    %15 = vector.load %arg3[%c0_6, %c0_7, %c0_8] : memref<1x8x128xf32, #tpu.memory_space<vmem>>, vector<1x8x128xf32>
    tpu.vector_store %arg3[%c0_6, %c0_7, %c0_8], %14 {strides = array<i32>} : memref<1x8x128xf32, #tpu.memory_space<vmem>>, vector<1x8x128xf32>,
    return
  }
  func.func @transform_0(%arg0: i32) -> (i32, i32) {
    %c0_i32 = arith.constant 0 : i32
    %c0_i32_0 = arith.constant 0 : i32
    return %c0_i32, %arg0 : i32, i32
  }
  func.func @transform_1(%arg0: i32) -> (i32, i32) {
    %c0_i32 = arith.constant 0 : i32
    %c0_i32_0 = arith.constant 0 : i32
    %c0_i32_1 = arith.constant 0 : i32
    return %c0_i32, %c0_i32_0 : i32, i32
  }
  func.func @transform_2(%arg0: i32) -> (i32, i32, i32) {
    %c0_i32 = arith.constant 0 : i32
    %c0_i32_0 = arith.constant 0 : i32
    %c0_i32_1 = arith.constant 0 : i32
    return %arg0, %c0_i32, %c0_i32_0 : i32, i32, i32
  }
}

</mosaic_0001>

<llo_original>
// kernel: tpu_custom_call.1
$region0: #{tpu_custom_call.1}
  #allocation0 [shape = 'u32[]', space=smem, size = 0x4, offset = 0x4, fixed_abs, tag = 'smem constant byte address 0x4 - core index']
  #allocation1 [shape = 'u32[144,128]{1,0:T(1,128)}', space=vmem, size = 0x12000, scoped, tag = 'internal scratch']
  %s0 = inlined_call_operand.vmem [shape: f32[8,2], index: 0, kind: input, shape index: {}]
  %s1 = inlined_call_operand.vmem [shape: f32[8,1], index: 1, kind: input, shape index: {}]
  %s2 = inlined_call_operand.hbm [shape: f32[1,8,128], index: 2, kind: output, shape index: {}]
  %s3 = sld [smem:[#allocation0]]
  $region18: #{tpu_custom_call.1} parent=0
    _
  %s5 = ssub.s32 1, %s3
  %s6 = scalar_select 0, %s5, %s3
  $region1: #{tpu_custom_call.1} parent=0
    #allocation2 [shape = 'u8[4096]{0}', space=vmem, size = 0x1000, scoped, tag = 'output window, operand 0, single buffered']
    #allocation3 [shape = 's32[1]{0}', space=sflag, size = 0x4, scoped, tag = 'scoped memory for tpu_custom_call.1']
    %7 = vsyncpa [#allocation3], 0
    // Predicated region
    $region2: #{tpu_custom_call.1} parent=1 // pred_check
      _
    $region3: #{tpu_custom_call.1} parent=1 // pred_check_branch
      %9 = sbr.rel (0) target = $region5
    $region4: #{tpu_custom_call.1} parent=1 // pred_region
      _
    $region5: #{tpu_custom_call.1} parent=1 // pred_fallthru
      _
    // Predicated region
    $region6: #{tpu_custom_call.1} parent=1 // pred_check
      _
    $region7: #{tpu_custom_call.1} parent=1 // pred_check_branch
      %11 = sbr.rel (0) target = $region9
    $region8: #{tpu_custom_call.1} parent=1 // pred_region
      _
    $region9: #{tpu_custom_call.1} parent=1 // pred_fallthru
      _
    %v12 = vld [vmem:[%s0] sm:$0xff]
    %v13 = vlog2.pop %v12
    %v14 = vmul.f32 %v13, 0.6931472
    %vm15 = vcmask 15360
    %v16 = vsel %vm15, %v14, 0.0
    %17 = vadd.xlane.f32.xlu0 %v16
    %v18 = vpop.xlane.xlu0 %17
    %v19 = vld [vmem:[%s1] sm:$0xff]
    %vm20 = vcmp.gt.f32.partialorder %v19, 0.0
    %v21 = vmul.f32 %v19, %v18
    %v22 = vsel %vm20, %v21, 0.0
    %vm23 = vcmask 7168
    %v24 = vsel %vm23, %v22, 0.0
    %25 = vadd.xlane.f32.xlu0 %v24
    %v26 = vpop.xlane.xlu0 %25
    %v27 = vrot.slane %v26, 4
    %v28 = vadd.f32 %v26, %v27
    %v29 = vrot.slane %v28, 2
    %v30 = vadd.f32 %v28, %v29
    %v31 = vrot.slane %v30, 1
    %v32 = vadd.f32 %v30, %v31
    %s33 = vtos %v32
    %v34 = vstv %s33
    %35 = vst [vmem:[#allocation2] sm:$0xff] %v34
    // Predicated region
    $region10: #{tpu_custom_call.1} parent=1 // pred_check
      _
    $region11: #{tpu_custom_call.1} parent=1 // pred_check_branch
      %37 = sbr.rel (0) target = $region13
    $region12: #{tpu_custom_call.1} parent=1 // pred_region
      %s39 = ssub.s32 128, 128
      %40 = vsyncadd [#allocation3], %s39
      %s42 = sshll.u32 [#allocation2], 4
      %s43 = int_to_ptr.vmem [resolvable:$true] %s42
      %45 = dma.vmem_to_hbm [thread:$0]  %s43, 128, %s2, [#allocation3]
    $region13: #{tpu_custom_call.1} parent=1 // pred_fallthru
      _
    // Predicated region
    $region14: #{tpu_custom_call.1} parent=1 // pred_check
      _
    $region15: #{tpu_custom_call.1} parent=1 // pred_check_branch
      %47 = sbr.rel (0) target = $region17
    $region16: #{tpu_custom_call.1} parent=1 // pred_region
      %48 = dma.done [#allocation3], 128
    $region17: #{tpu_custom_call.1} parent=1 // pred_fallthru
      _
    %49 = vsyncpa [#allocation3], 1

</llo_original>
